<compile_context>
chip_gen: v5e
topology: v5e:2x2
jax: 0.10.0
libtpu: 0.0.40
codegen_flags: <defaults>
</compile_context>

<pallas_src>
import functools

import jax
import jax.numpy as jnp
from jax.experimental import pallas as pl
from jax.experimental.pallas import tpu as pltpu

HIDDEN = 256
LANE = 128


def _round_up(n, m):
    return ((n + m - 1) // m) * m


def _actor_mlp_kernel(max_action, x_ref, w1_ref, b1_ref, w2_ref, b2_ref,
                      w3_ref, b3_ref, wa_ref, ba_ref, out_ref):
    """One batch tile of the 4-layer MLP + tanh head.

    Matmul operands are bf16 (fast MXU path); accumulation, bias add and tanh
    stay in f32 (v5e has no bf16 VPU/EUP).  Inter-layer activations are stored
    bf16 to cut vreg pressure / spill traffic.
    """
    x = x_ref[...]
    h = jnp.dot(x, w1_ref[...], preferred_element_type=jnp.float32) + b1_ref[...]
    h = jnp.maximum(h, 0.0).astype(jnp.bfloat16)
    h = jnp.dot(h, w2_ref[...], preferred_element_type=jnp.float32) + b2_ref[...]
    h = jnp.maximum(h, 0.0).astype(jnp.bfloat16)
    h = jnp.dot(h, w3_ref[...], preferred_element_type=jnp.float32) + b3_ref[...]
    h = jnp.maximum(h, 0.0).astype(jnp.bfloat16)
    a = jnp.dot(h, wa_ref[...], preferred_element_type=jnp.float32) + ba_ref[...]
    t = jnp.tanh(a)
    if max_action != 1.0:          # max_action is a static Python float
        t = max_action * t
    out_ref[...] = t


def init_actor_params(key, env_params):
    """PyTorch-default-style init (uniform +-1/sqrt(fan_in)).

    Weights: (in, out) bf16, with fc1 zero-padded along K to a multiple of 128
    and action_out zero-padded along N to 128 (lane-dense I/O).  Biases are
    (1, out) f32 (action_out bias zero-padded to 128).
    """
    inp_dim = env_params['gripper'] + env_params['n_objects'] * (
        env_params['object'] + env_params['goal'])
    act_dim = env_params['action']
    inp_pad = _round_up(inp_dim, LANE)
    act_pad = _round_up(act_dim, LANE)

    dims = [('fc1', inp_dim, HIDDEN, inp_pad, HIDDEN),
            ('fc2', HIDDEN, HIDDEN, HIDDEN, HIDDEN),
            ('fc3', HIDDEN, HIDDEN, HIDDEN, HIDDEN),
            ('action_out', HIDDEN, act_dim, HIDDEN, act_pad)]
    params = {}
    for name, fan_in, fan_out, in_p, out_p in dims:
        key, kw, kb = jax.random.split(key, 3)
        bound = 1.0 / (fan_in ** 0.5)
        w = jax.random.uniform(kw, (fan_in, fan_out), jnp.float32,
                               minval=-bound, maxval=bound)
        b = jax.random.uniform(kb, (1, fan_out), jnp.float32,
                               minval=-bound, maxval=bound)
        if (in_p, out_p) != (fan_in, fan_out):
            w = jnp.pad(w, ((0, in_p - fan_in), (0, out_p - fan_out)))
            b = jnp.pad(b, ((0, 0), (0, out_p - fan_out)))
        params[name + '_w'] = w.astype(jnp.bfloat16)
        params[name + '_b'] = b
    return params


@functools.partial(jax.jit, static_argnames=('max_action', 'act_dim'))
def _actor_forward_jit(grip, obj, g, params, *, max_action, act_dim):
    # ---- JAX glue (fused under this jit): flatten objects/goals, concat ------
    batch_dims = obj.shape[:-2]
    obj = obj.reshape(batch_dims + (-1,))
    g = g.reshape(batch_dims + (-1,))
    x = jnp.concatenate((grip, obj, g), axis=-1)

    inp_dim = x.shape[-1]
    inp_pad = params['fc1_w'].shape[0]       # K padded to multiple of 128
    act_pad = params['action_out_w'].shape[-1]  # N padded to 128

    x2d = x.reshape((-1, inp_dim)).astype(jnp.bfloat16)
    b = x2d.shape[0]

    # Batch tiling: tiny batches -> one full-batch step; large batches -> big
    # tiles (up to 1024 rows) but always >= 2 grid steps so the "parallel"
    # batch axis can use both v7x TensorCores.  Rows rounded to 16 (bf16 pack).
    b16 = _round_up(max(b, 1), 16)
    if b16 <= 256:
        TM = b16
    else:
        TM = min(1024, _round_up((b16 + 1) // 2, 16))
    m_pad = _round_up(b16, TM)

    pad_rows = m_pad - b
    pad_cols = inp_pad - inp_dim
    if pad_rows or pad_cols:
        x2d = jnp.pad(x2d, ((0, pad_rows), (0, pad_cols)))
    grid = (m_pad // TM,)

    resident = lambda i: (0, 0)   # weights / biases stay VMEM-resident
    row_tile = lambda i: (i, 0)   # x / out batch tiles stream through

    flops = 2 * m_pad * (inp_pad * HIDDEN + 2 * HIDDEN * HIDDEN + HIDDEN * act_pad)
    param_bytes = sum(
        int(params[k].size) * (2 if params[k].dtype == jnp.bfloat16 else 4)
        for k in params)
    bytes_accessed = int(m_pad * inp_pad * 2 + m_pad * act_pad * 4 + param_bytes)

    out = pl.pallas_call(
        functools.partial(_actor_mlp_kernel, max_action),
        grid=grid,
        in_specs=[
            pl.BlockSpec((TM, inp_pad), row_tile),      # x tile
            pl.BlockSpec((inp_pad, HIDDEN), resident),  # fc1 W
            pl.BlockSpec((1, HIDDEN), resident),        # fc1 b
            pl.BlockSpec((HIDDEN, HIDDEN), resident),   # fc2 W
            pl.BlockSpec((1, HIDDEN), resident),        # fc2 b
            pl.BlockSpec((HIDDEN, HIDDEN), resident),   # fc3 W
            pl.BlockSpec((1, HIDDEN), resident),        # fc3 b
            pl.BlockSpec((HIDDEN, act_pad), resident),  # action_out W (N=128)
            pl.BlockSpec((1, act_pad), resident),       # action_out b (N=128)
        ],
        out_specs=pl.BlockSpec((TM, act_pad), row_tile),
        out_shape=jax.ShapeDtypeStruct((m_pad, act_pad), jnp.float32),
        compiler_params=pltpu.CompilerParams(
            dimension_semantics=("parallel",)),
        cost_estimate=pl.CostEstimate(
            flops=int(flops),
            transcendentals=int(m_pad * act_pad),
            bytes_accessed=bytes_accessed),
    )(x2d,
      params['fc1_w'], params['fc1_b'],
      params['fc2_w'], params['fc2_b'],
      params['fc3_w'], params['fc3_b'],
      params['action_out_w'], params['action_out_b'])

    return out[:b, :act_dim].reshape(batch_dims + (act_dim,))


def actor_forward(grip, obj, g, params, env_params):
    """JAX/Pallas equivalent of actor.forward."""
    # max_action / act_dim are static (baked into the kernel); changes retrace.
    return _actor_forward_jit(grip, obj, g, params,
                              max_action=float(env_params['action_max']),
                              act_dim=int(env_params['action']))


def _actor_forward_ref(grip, obj, g, params, env_params):
    """Pure-JAX reference using the same bf16 operand quantization."""
    batch_dims = obj.shape[:-2]
    obj = obj.reshape(batch_dims + (-1,))
    g = g.reshape(batch_dims + (-1,))
    x = jnp.concatenate((grip, obj, g), axis=-1)
    inp_dim = x.shape[-1]
    inp_pad = params['fc1_w'].shape[0]
    x = jnp.pad(x, [(0, 0)] * (x.ndim - 1) + [(0, inp_pad - inp_dim)])
    h = x.astype(jnp.bfloat16)
    for name in ('fc1', 'fc2', 'fc3'):
        h = jnp.dot(h, params[name + '_w'],
                    preferred_element_type=jnp.float32) + params[name + '_b']
        h = jnp.maximum(h, 0.0).astype(jnp.bfloat16)
    a = jnp.dot(h, params['action_out_w'],
                preferred_element_type=jnp.float32) + params['action_out_b']
    a = float(env_params['action_max']) * jnp.tanh(a)
    return a[..., :env_params['action']]


if __name__ == "__main__":
    env_params = {
        'gripper': 10,
        'object': 15,
        'goal': 3,
        'n_objects': 3,
        'action': 4,
        'action_max': 1.0,
    }

    key = jax.random.PRNGKey(0)
    kp, kg, ko, kgoal = jax.random.split(key, 4)

    params = init_actor_params(kp, env_params)

    batch = 2
    n_obj = env_params['n_objects']
    grip = jax.random.normal(kg, (batch, env_params['gripper']), jnp.float32)
    obj = jax.random.normal(ko, (batch, n_obj, env_params['object']), jnp.float32)
    g = jax.random.normal(kgoal, (batch, n_obj, env_params['goal']), jnp.float32)

    actions = actor_forward(grip, obj, g, params, env_params)
    jax.block_until_ready(actions)

    assert actions.shape == (batch, env_params['action'])
    assert bool(jnp.all(jnp.isfinite(actions)))
    assert bool(jnp.all(jnp.abs(actions) <= env_params['action_max'] + 1e-5))

    # Loose check vs. a pure-JAX reference (weights are bf16 by design, so
    # tolerances reflect MXU-vs-XLA rounding only, not f32 PyTorch parity).
    ref = _actor_forward_ref(grip, obj, g, params, env_params)
    assert bool(jnp.max(jnp.abs(actions - ref)) < 5e-2)

    print("KERNEL_OK")
</pallas_src>

<mosaic_0001>
module attributes {stable_mosaic.version = 11 : i64} {
  func.func @_actor_mlp_kernel(%arg0: i32, %arg1: memref<16x128xbf16, #tpu.memory_space<vmem>>, %arg2: memref<128x256xbf16, #tpu.memory_space<vmem>>, %arg3: memref<1x256xf32, #tpu.memory_space<vmem>>, %arg4: memref<256x256xbf16, #tpu.memory_space<vmem>>, %arg5: memref<1x256xf32, #tpu.memory_space<vmem>>, %arg6: memref<256x256xbf16, #tpu.memory_space<vmem>>, %arg7: memref<1x256xf32, #tpu.memory_space<vmem>>, %arg8: memref<256x128xbf16, #tpu.memory_space<vmem>>, %arg9: memref<1x128xf32, #tpu.memory_space<vmem>>, %arg10: memref<16x128xf32, #tpu.memory_space<vmem>>) attributes {dimension_semantics = [#tpu.dimension_semantics<parallel>], iteration_bounds = array<i64: 1>, scalar_prefetch = 0 : i64, scratch_operands = 0 : i64, tpu.core_type = #tpu.core_type<tc>, window_params = [{transform_indices = @transform_0, window_bounds = array<i64: 16, 128>}, {pipeline_mode = #tpu.pipeline_mode<synchronous>, transform_indices = @transform_1, window_bounds = array<i64: 128, 256>}, {pipeline_mode = #tpu.pipeline_mode<synchronous>, transform_indices = @transform_2, window_bounds = array<i64: 1, 256>}, {pipeline_mode = #tpu.pipeline_mode<synchronous>, transform_indices = @transform_3, window_bounds = array<i64: 256, 256>}, {pipeline_mode = #tpu.pipeline_mode<synchronous>, transform_indices = @transform_4, window_bounds = array<i64: 1, 256>}, {pipeline_mode = #tpu.pipeline_mode<synchronous>, transform_indices = @transform_5, window_bounds = array<i64: 256, 256>}, {pipeline_mode = #tpu.pipeline_mode<synchronous>, transform_indices = @transform_6, window_bounds = array<i64: 1, 256>}, {pipeline_mode = #tpu.pipeline_mode<synchronous>, transform_indices = @transform_7, window_bounds = array<i64: 256, 128>}, {pipeline_mode = #tpu.pipeline_mode<synchronous>, transform_indices = @transform_8, window_bounds = array<i64: 1, 128>}, {transform_indices = @transform_9, window_bounds = array<i64: 16, 128>}]} {
    %c0 = arith.constant 0 : index
    %c0_0 = arith.constant 0 : index
    %0 = vector.load %arg1[%c0, %c0_0] : memref<16x128xbf16, #tpu.memory_space<vmem>>, vector<16x128xbf16>
    %c0_1 = arith.constant 0 : index
    %c0_2 = arith.constant 0 : index
    %1 = vector.load %arg2[%c0_1, %c0_2] : memref<128x256xbf16, #tpu.memory_space<vmem>>, vector<128x256xbf16>
    %cst = arith.constant dense<0.000000e+00> : vector<16x256xf32>
    %2 = tpu.matmul %0, %1, %cst {dimension_numbers = #tpu.dot_dimension_numbers<[1], [0], [0], [1], [0, 0, 1, 1], [], []>} : vector<16x128xbf16>, vector<128x256xbf16>, vector<16x256xf32> -> vector<16x256xf32>
    %c0_3 = arith.constant 0 : index
    %c0_4 = arith.constant 0 : index
    %3 = vector.load %arg3[%c0_3, %c0_4] : memref<1x256xf32, #tpu.memory_space<vmem>>, vector<1x256xf32>
    %4 = vector.broadcast %3 : vector<1x256xf32> to vector<16x256xf32>
    %5 = arith.addf %2, %4 : vector<16x256xf32>
    %cst_5 = arith.constant 0.000000e+00 : f32
    %6 = vector.broadcast %cst_5 : f32 to vector<16x256xf32>
    %7 = arith.maximumf %5, %6 : vector<16x256xf32>
    %8 = arith.truncf %7 : vector<16x256xf32> to vector<16x256xbf16>
    %c0_6 = arith.constant 0 : index
    %c0_7 = arith.constant 0 : index
    %9 = vector.load %arg4[%c0_6, %c0_7] : memref<256x256xbf16, #tpu.memory_space<vmem>>, vector<256x256xbf16>
    %cst_8 = arith.constant dense<0.000000e+00> : vector<16x256xf32>
    %10 = tpu.matmul %8, %9, %cst_8 {dimension_numbers = #tpu.dot_dimension_numbers<[1], [0], [0], [1], [0, 0, 1, 1], [], []>} : vector<16x256xbf16>, vector<256x256xbf16>, vector<16x256xf32> -> vector<16x256xf32>
    %c0_9 = arith.constant 0 : index
    %c0_10 = arith.constant 0 : index
    %11 = vector.load %arg5[%c0_9, %c0_10] : memref<1x256xf32, #tpu.memory_space<vmem>>, vector<1x256xf32>
    %12 = vector.broadcast %11 : vector<1x256xf32> to vector<16x256xf32>
    %13 = arith.addf %10, %12 : vector<16x256xf32>
    %cst_11 = arith.constant 0.000000e+00 : f32
    %14 = vector.broadcast %cst_11 : f32 to vector<16x256xf32>
    %15 = arith.maximumf %13, %14 : vector<16x256xf32>
    %16 = arith.truncf %15 : vector<16x256xf32> to vector<16x256xbf16>
    %c0_12 = arith.constant 0 : index
    %c0_13 = arith.constant 0 : index
    %17 = vector.load %arg6[%c0_12, %c0_13] : memref<256x256xbf16, #tpu.memory_space<vmem>>, vector<256x256xbf16>
    %cst_14 = arith.constant dense<0.000000e+00> : vector<16x256xf32>
    %18 = tpu.matmul %16, %17, %cst_14 {dimension_numbers = #tpu.dot_dimension_numbers<[1], [0], [0], [1], [0, 0, 1, 1], [], []>} : vector<16x256xbf16>, vector<256x256xbf16>, vector<16x256xf32> -> vector<16x256xf32>
    %c0_15 = arith.constant 0 : index
    %c0_16 = arith.constant 0 : index
    %19 = vector.load %arg7[%c0_15, %c0_16] : memref<1x256xf32, #tpu.memory_space<vmem>>, vector<1x256xf32>
    %20 = vector.broadcast %19 : vector<1x256xf32> to vector<16x256xf32>
    %21 = arith.addf %18, %20 : vector<16x256xf32>
    %cst_17 = arith.constant 0.000000e+00 : f32
    %22 = vector.broadcast %cst_17 : f32 to vector<16x256xf32>
    %23 = arith.maximumf %21, %22 : vector<16x256xf32>
    %24 = arith.truncf %23 : vector<16x256xf32> to vector<16x256xbf16>
    %c0_18 = arith.constant 0 : index
    %c0_19 = arith.constant 0 : index
    %25 = vector.load %arg8[%c0_18, %c0_19] : memref<256x128xbf16, #tpu.memory_space<vmem>>, vector<256x128xbf16>
    %cst_20 = arith.constant dense<0.000000e+00> : vector<16x128xf32>
    %26 = tpu.matmul %24, %25, %cst_20 {dimension_numbers = #tpu.dot_dimension_numbers<[1], [0], [0], [1], [0, 0, 1, 1], [], []>} : vector<16x256xbf16>, vector<256x128xbf16>, vector<16x128xf32> -> vector<16x128xf32>
    %c0_21 = arith.constant 0 : index
    %c0_22 = arith.constant 0 : index
    %27 = vector.load %arg9[%c0_21, %c0_22] : memref<1x128xf32, #tpu.memory_space<vmem>>, vector<1x128xf32>
    %28 = vector.broadcast %27 : vector<1x128xf32> to vector<16x128xf32>
    %29 = arith.addf %26, %28 : vector<16x128xf32>
    %30 = math.tanh %29 : vector<16x128xf32>
    %c0_23 = arith.constant 0 : index
    %c0_24 = arith.constant 0 : index
    %31 = vector.load %arg10[%c0_23, %c0_24] : memref<16x128xf32, #tpu.memory_space<vmem>>, vector<16x128xf32>
    tpu.vector_store %arg10[%c0_23, %c0_24], %30 {strides = array<i32>} : memref<16x128xf32, #tpu.memory_space<vmem>>, vector<16x128xf32>,
    return
  }
  func.func @transform_0(%arg0: i32) -> (i32, i32) {
    %c0_i32 = arith.constant 0 : i32
    %c0_i32_0 = arith.constant 0 : i32
    return %arg0, %c0_i32 : i32, i32
  }
  func.func @transform_1(%arg0: i32) -> (i32, i32) {
    %c0_i32 = arith.constant 0 : i32
    %c0_i32_0 = arith.constant 0 : i32
    %c0_i32_1 = arith.constant 0 : i32
    return %c0_i32, %c0_i32_0 : i32, i32
  }
  func.func @transform_2(%arg0: i32) -> (i32, i32) {
    %c0_i32 = arith.constant 0 : i32
    %c0_i32_0 = arith.constant 0 : i32
    %c0_i32_1 = arith.constant 0 : i32
    return %c0_i32, %c0_i32_0 : i32, i32
  }
  func.func @transform_3(%arg0: i32) -> (i32, i32) {
    %c0_i32 = arith.constant 0 : i32
    %c0_i32_0 = arith.constant 0 : i32
    %c0_i32_1 = arith.constant 0 : i32
    return %c0_i32, %c0_i32_0 : i32, i32
  }
  func.func @transform_4(%arg0: i32) -> (i32, i32) {
    %c0_i32 = arith.constant 0 : i32
    %c0_i32_0 = arith.constant 0 : i32
    %c0_i32_1 = arith.constant 0 : i32
    return %c0_i32, %c0_i32_0 : i32, i32
  }
  func.func @transform_5(%arg0: i32) -> (i32, i32) {
    %c0_i32 = arith.constant 0 : i32
    %c0_i32_0 = arith.constant 0 : i32
    %c0_i32_1 = arith.constant 0 : i32
    return %c0_i32, %c0_i32_0 : i32, i32
  }
  func.func @transform_6(%arg0: i32) -> (i32, i32) {
    %c0_i32 = arith.constant 0 : i32
    %c0_i32_0 = arith.constant 0 : i32
    %c0_i32_1 = arith.constant 0 : i32
    return %c0_i32, %c0_i32_0 : i32, i32
  }
  func.func @transform_7(%arg0: i32) -> (i32, i32) {
    %c0_i32 = arith.constant 0 : i32
    %c0_i32_0 = arith.constant 0 : i32
    %c0_i32_1 = arith.constant 0 : i32
    return %c0_i32, %c0_i32_0 : i32, i32
  }
  func.func @transform_8(%arg0: i32) -> (i32, i32) {
    %c0_i32 = arith.constant 0 : i32
    %c0_i32_0 = arith.constant 0 : i32
    %c0_i32_1 = arith.constant 0 : i32
    return %c0_i32, %c0_i32_0 : i32, i32
  }
  func.func @transform_9(%arg0: i32) -> (i32, i32) {
    %c0_i32 = arith.constant 0 : i32
    %c0_i32_0 = arith.constant 0 : i32
    return %arg0, %c0_i32 : i32, i32
  }
}

</mosaic_0001>

<llo_original>
// kernel: _actor_forward_jit.1
$region0: #{_actor_forward_jit.1}
  #allocation0 [shape = 'u32[]', space=smem, size = 0x4, offset = 0x4, fixed_abs, tag = 'smem constant byte address 0x4 - core index']
  #allocation1 [shape = 'u32[72,128]{1,0:T(1,128)}', space=vmem, size = 0x9000, scoped, tag = 'internal scratch']
  %s0 = inlined_call_operand.vmem [shape: bf16[16,128], index: 0, kind: input, shape index: {}]
  %s1 = inlined_call_operand.hbm [shape: bf16[128,256], index: 1, kind: input, shape index: {}]
  %s2 = inlined_call_operand.vmem [shape: f32[1,256], index: 2, kind: input, shape index: {}]
  %s3 = inlined_call_operand.hbm [shape: bf16[256,256], index: 3, kind: input, shape index: {}]
  %s4 = inlined_call_operand.vmem [shape: f32[1,256], index: 4, kind: input, shape index: {}]
  %s5 = inlined_call_operand.hbm [shape: bf16[256,256], index: 5, kind: input, shape index: {}]
  %s6 = inlined_call_operand.vmem [shape: f32[1,256], index: 6, kind: input, shape index: {}]
  %s7 = inlined_call_operand.hbm [shape: bf16[256,128], index: 7, kind: input, shape index: {}]
  %s8 = inlined_call_operand.vmem [shape: f32[1,128], index: 8, kind: input, shape index: {}]
  %s9 = inlined_call_operand.vmem [shape: f32[16,128], index: 9, kind: output, shape index: {}]
  %s10 = sld [smem:[#allocation0]]
  $region62: #{_actor_forward_jit.1} parent=0
    _
  %s12 = ssub.s32 1, %s10
  %s13 = scalar_select 0, %s12, %s10
  $region1: #{_actor_forward_jit.1} parent=0
    #allocation2 [shape = 'u8[65536]{0}', space=vmem, size = 0x10000, scoped, tag = 'input window, operand 1, single buffered']
    #allocation3 [shape = 's32[1]{0}', space=sflag, size = 0x4, scoped, tag = 'scoped memory for _actor_forward_jit.1']
    #allocation4 [shape = 'u8[131072]{0}', space=vmem, size = 0x20000, scoped, tag = 'input window, operand 3, single buffered']
    #allocation5 [shape = 's32[1]{0}', space=sflag, size = 0x4, scoped, tag = 'scoped memory for _actor_forward_jit.1']
    #allocation6 [shape = 'u8[131072]{0}', space=vmem, size = 0x20000, scoped, tag = 'input window, operand 5, single buffered']
    #allocation7 [shape = 'u8[65536]{0}', space=vmem, size = 0x10000, scoped, tag = 'input window, operand 7, single buffered']
    #allocation8 [shape = 's32[1]{0}', space=sflag, size = 0x4, scoped, tag = 'scoped memory for _actor_forward_jit.1']
    %14 = vsyncpa [#allocation3], 0
    %15 = vsyncpa [#allocation5], 0
    %16 = vsyncpa [#allocation8], 0
    // Predicated region
    $region2: #{_actor_forward_jit.1} parent=1 // pred_check
      _
    $region3: #{_actor_forward_jit.1} parent=1 // pred_check_branch
      %18 = sbr.rel (0) target = $region5
    $region4: #{_actor_forward_jit.1} parent=1 // pred_region
      _
    $region5: #{_actor_forward_jit.1} parent=1 // pred_fallthru
      _
    // Predicated region
    $region6: #{_actor_forward_jit.1} parent=1 // pred_check
      _
    $region7: #{_actor_forward_jit.1} parent=1 // pred_check_branch
      %20 = sbr.rel (0) target = $region9
    $region8: #{_actor_forward_jit.1} parent=1 // pred_region
      %22 = vsyncadd [#allocation3], 0
      %s23 = sshll.u32 %s1, 4
      %s24 = int_to_ptr.hbm [resolvable:$true] %s23
      %s25 = sshll.u32 [#allocation2], 4
      %s26 = int_to_ptr.vmem [resolvable:$true] %s25
      %31 = dma.hbm_to_vmem [thread:$0]  %s24, 2048, %s26, [#allocation3], 128, 128, 8
    $region9: #{_actor_forward_jit.1} parent=1 // pred_fallthru
      _
    // Predicated region
    $region10: #{_actor_forward_jit.1} parent=1 // pred_check
      _
    $region11: #{_actor_forward_jit.1} parent=1 // pred_check_branch
      %33 = sbr.rel (0) target = $region13
    $region12: #{_actor_forward_jit.1} parent=1 // pred_region
      _
    $region13: #{_actor_forward_jit.1} parent=1 // pred_fallthru
      _
    // Predicated region
    $region14: #{_actor_forward_jit.1} parent=1 // pred_check
      _
    $region15: #{_actor_forward_jit.1} parent=1 // pred_check_branch
      %35 = sbr.rel (0) target = $region17
    $region16: #{_actor_forward_jit.1} parent=1 // pred_region
      %37 = vsyncadd [#allocation5], 0
      %s38 = sshll.u32 %s3, 4
      %s39 = int_to_ptr.hbm [resolvable:$true] %s38
      %s40 = sshll.u32 [#allocation4], 4
      %s41 = int_to_ptr.vmem [resolvable:$true] %s40
      %46 = dma.hbm_to_vmem [thread:$0]  %s39, 4096, %s41, [#allocation5], 128, 128, 8
    $region17: #{_actor_forward_jit.1} parent=1 // pred_fallthru
      _
    // Predicated region
    $region18: #{_actor_forward_jit.1} parent=1 // pred_check
      _
    $region19: #{_actor_forward_jit.1} parent=1 // pred_check_branch
      %48 = sbr.rel (0) target = $region21
    $region20: #{_actor_forward_jit.1} parent=1 // pred_region
      _
    $region21: #{_actor_forward_jit.1} parent=1 // pred_fallthru
      _
    // Predicated region
    $region22: #{_actor_forward_jit.1} parent=1 // pred_check
      _
    $region23: #{_actor_forward_jit.1} parent=1 // pred_check_branch
      %50 = sbr.rel (0) target = $region25
    $region24: #{_actor_forward_jit.1} parent=1 // pred_region
      %52 = vsyncadd [#allocation5], 0
      %s53 = sshll.u32 %s5, 4
      %s54 = int_to_ptr.hbm [resolvable:$true] %s53
      %s55 = sshll.u32 [#allocation6], 4
      %s56 = int_to_ptr.vmem [resolvable:$true] %s55
      %61 = dma.hbm_to_vmem [thread:$0]  %s54, 4096, %s56, [#allocation5], 128, 128, 8
    $region25: #{_actor_forward_jit.1} parent=1 // pred_fallthru
      _
    // Predicated region
    $region26: #{_actor_forward_jit.1} parent=1 // pred_check
      _
    $region27: #{_actor_forward_jit.1} parent=1 // pred_check_branch
      %63 = sbr.rel (0) target = $region29
    $region28: #{_actor_forward_jit.1} parent=1 // pred_region
      _
    $region29: #{_actor_forward_jit.1} parent=1 // pred_fallthru
      _
    // Predicated region
    $region30: #{_actor_forward_jit.1} parent=1 // pred_check
      _
    $region31: #{_actor_forward_jit.1} parent=1 // pred_check_branch
      %65 = sbr.rel (0) target = $region33
    $region32: #{_actor_forward_jit.1} parent=1 // pred_region
      %67 = vsyncadd [#allocation8], 0
      %s68 = sshll.u32 %s7, 4
      %s69 = int_to_ptr.hbm [resolvable:$true] %s68
      %s70 = sshll.u32 [#allocation7], 4
      %s71 = int_to_ptr.vmem [resolvable:$true] %s70
      %76 = dma.hbm_to_vmem [thread:$0]  %s69, 2048, %s71, [#allocation8], 64, 64, 4
    $region33: #{_actor_forward_jit.1} parent=1 // pred_fallthru
      _
    // Predicated region
    $region34: #{_actor_forward_jit.1} parent=1 // pred_check
      _
    $region35: #{_actor_forward_jit.1} parent=1 // pred_check_branch
      %78 = sbr.rel (0) target = $region37
    $region36: #{_actor_forward_jit.1} parent=1 // pred_region
      _
    $region37: #{_actor_forward_jit.1} parent=1 // pred_fallthru
      _
    // Predicated region
    $region38: #{_actor_forward_jit.1} parent=1 // pred_check
      _
    $region39: #{_actor_forward_jit.1} parent=1 // pred_check_branch
      %80 = sbr.rel (0) target = $region41
    $region40: #{_actor_forward_jit.1} parent=1 // pred_region
      %82 = dma.done [#allocation3], 2048
    $region41: #{_actor_forward_jit.1} parent=1 // pred_fallthru
      _
    // Predicated region
    $region42: #{_actor_forward_jit.1} parent=1 // pred_check
      _
    $region43: #{_actor_forward_jit.1} parent=1 // pred_check_branch
      %84 = sbr.rel (0) target = $region45
    $region44: #{_actor_forward_jit.1} parent=1 // pred_region
      %86 = dma.done [#allocation5], 4096
    $region45: #{_actor_forward_jit.1} parent=1 // pred_fallthru
      _
    // Predicated region
    $region46: #{_actor_forward_jit.1} parent=1 // pred_check
      _
    $region47: #{_actor_forward_jit.1} parent=1 // pred_check_branch
      %88 = sbr.rel (0) target = $region49
    $region48: #{_actor_forward_jit.1} parent=1 // pred_region
      %90 = dma.done [#allocation5], 4096
    $region49: #{_actor_forward_jit.1} parent=1 // pred_fallthru
      _
    // Predicated region
    $region50: #{_actor_forward_jit.1} parent=1 // pred_check
      _
    $region51: #{_actor_forward_jit.1} parent=1 // pred_check_branch
      %92 = sbr.rel (0) target = $region53
    $region52: #{_actor_forward_jit.1} parent=1 // pred_region
      %94 = dma.done [#allocation8], 2048
    $region53: #{_actor_forward_jit.1} parent=1 // pred_fallthru
      _
    %v95 = vld [vmem:[%s0] sm:$0xf]
    %v96 = vld [vmem:[%s0 + $0x4] sm:$0xf]
    %v97 = vld [vmem:[#allocation2] sm:$0xff]
    %v98 = vld [vmem:[#allocation2 + $0x8] sm:$0xff]
    %v99 = vld [vmem:[#allocation2 + $0x10] sm:$0xff]
    %v100 = vld [vmem:[#allocation2 + $0x18] sm:$0xff]
    %v101 = vld [vmem:[#allocation2 + $0x20] sm:$0xff]
    %v102 = vld [vmem:[#allocation2 + $0x28] sm:$0xff]
    %v103 = vld [vmem:[#allocation2 + $0x30] sm:$0xff]
    %v104 = vld [vmem:[#allocation2 + $0x38] sm:$0xff]
    %v105 = vld [vmem:[#allocation2 + $0x40] sm:$0xff]
    %v106 = vld [vmem:[#allocation2 + $0x48] sm:$0xff]
    %v107 = vld [vmem:[#allocation2 + $0x50] sm:$0xff]
    %v108 = vld [vmem:[#allocation2 + $0x58] sm:$0xff]
    %v109 = vld [vmem:[#allocation2 + $0x60] sm:$0xff]
    %v110 = vld [vmem:[#allocation2 + $0x68] sm:$0xff]
    %v111 = vld [vmem:[#allocation2 + $0x70] sm:$0xff]
    %v112 = vld [vmem:[#allocation2 + $0x78] sm:$0xff]
    %v113 = vld [vmem:[%s2] sm:$0x3]
    %v115 = vperm.slane %v113, 0
    %v116 = vperm.slane %v113, 1
    %v121 = vunpack.c.l.b16 %v95
    %v122 = vunpack.c.l.b16 %v96
    %v123 = vpack.c.b16 %v122, %v121
    %v141 = vunpack.c.l.b16 %v97
    %v142 = vunpack.c.h.b16 %v97
    %v143 = vunpack.c.l.b16 %v98
    %v144 = vunpack.c.h.b16 %v98
    %v145 = vunpack.c.l.b16 %v99
    %v146 = vunpack.c.h.b16 %v99
    %v147 = vunpack.c.l.b16 %v100
    %v148 = vunpack.c.h.b16 %v100
    %v149 = vunpack.c.l.b16 %v101
    %v150 = vunpack.c.h.b16 %v101
    %v151 = vunpack.c.l.b16 %v102
    %v152 = vunpack.c.h.b16 %v102
    %v153 = vunpack.c.l.b16 %v103
    %v154 = vunpack.c.h.b16 %v103
    %v155 = vunpack.c.l.b16 %v104
    %v156 = vunpack.c.h.b16 %v104
    %v157 = vunpack.c.l.b16 %v105
    %v158 = vunpack.c.h.b16 %v105
    %v159 = vunpack.c.l.b16 %v106
    %v160 = vunpack.c.h.b16 %v106
    %v161 = vunpack.c.l.b16 %v107
    %v162 = vunpack.c.h.b16 %v107
    %v163 = vunpack.c.l.b16 %v108
    %v164 = vunpack.c.h.b16 %v108
    %v165 = vunpack.c.l.b16 %v109
    %v166 = vunpack.c.h.b16 %v109
    %v167 = vunpack.c.l.b16 %v110
    %v168 = vunpack.c.h.b16 %v110
    %v169 = vunpack.c.l.b16 %v111
    %v170 = vunpack.c.h.b16 %v111
    %v171 = vunpack.c.l.b16 %v112
    %v172 = vunpack.c.h.b16 %v112
    %v173 = vpack.c.b16 %v143, %v141
    %v174 = vpack.c.b16 %v144, %v142
    %v175 = vpack.c.b16 %v147, %v145
    %v176 = vpack.c.b16 %v148, %v146
    %v177 = vpack.c.b16 %v151, %v149
    %v178 = vpack.c.b16 %v152, %v150
    %v179 = vpack.c.b16 %v155, %v153
    %v180 = vpack.c.b16 %v156, %v154
    %v181 = vpack.c.b16 %v159, %v157
    %v182 = vpack.c.b16 %v160, %v158
    %v183 = vpack.c.b16 %v163, %v161
    %v184 = vpack.c.b16 %v164, %v162
    %v185 = vpack.c.b16 %v167, %v165
    %v186 = vpack.c.b16 %v168, %v166
    %v187 = vpack.c.b16 %v171, %v169
    %v188 = vpack.c.b16 %v172, %v170
    %205 = vmatpush.bf16.msra.mxu0 %v187
    %206 = vmatpush.bf16.msra.mxu0 %v185
    %207 = vmatpush.bf16.msra.mxu0 %v183
    %208 = vmatpush.bf16.msra.mxu0 %v181
    %209 = vmatpush.bf16.msra.mxu0 %v179
    %210 = vmatpush.bf16.msra.mxu0 %v177
    %211 = vmatpush.bf16.msra.mxu0 %v175
    %212 = vmatpush.bf16.msra.mxu0 %v173
    %213 = vmatmul.bf16.gmra.mxu0 %v123
    %v214 = vpop.f32.mrf.mxu0
    %v215 = vadd.f32 %v115, %v214
    %v216 = vpop.f32.mrf.mxu0
    %v217 = vadd.f32 %v115, %v216
    %218 = vdwg.mxu0
    %219 = vmatpush.bf16.msra.mxu0 %v188
    %220 = vmatpush.bf16.msra.mxu0 %v186
    %221 = vmatpush.bf16.msra.mxu0 %v184
    %222 = vmatpush.bf16.msra.mxu0 %v182
    %223 = vmatpush.bf16.msra.mxu0 %v180
    %224 = vmatpush.bf16.msra.mxu0 %v178
    %225 = vmatpush.bf16.msra.mxu0 %v176
    %226 = vmatpush.bf16.msra.mxu0 %v174
    %227 = vmatmul.bf16.gmra.mxu0 %v123
    %v228 = vpop.f32.mrf.mxu0
    %v229 = vadd.f32 %v116, %v228
    %v230 = vpop.f32.mrf.mxu0
    %v231 = vadd.f32 %v116, %v230
    %232 = vdwg.mxu0
    %v233 = vmax.f32 %v215, 0.0
    %v234 = vmax.f32 %v229, 0.0
    %v235 = vmax.f32 %v217, 0.0
    %v236 = vmax.f32 %v231, 0.0
    %v237 = vpack.c.bf16 %v235, %v233
    %v238 = vpack.c.bf16 %v236, %v234
    %v239 = vld [vmem:[#allocation4] sm:$0xff]
    %v240 = vld [vmem:[#allocation4 + $0x8] sm:$0xff]
    %v241 = vld [vmem:[#allocation4 + $0x10] sm:$0xff]
    %v242 = vld [vmem:[#allocation4 + $0x18] sm:$0xff]
    %v243 = vld [vmem:[#allocation4 + $0x20] sm:$0xff]
    %v244 = vld [vmem:[#allocation4 + $0x28] sm:$0xff]
    %v245 = vld [vmem:[#allocation4 + $0x30] sm:$0xff]
    %v246 = vld [vmem:[#allocation4 + $0x38] sm:$0xff]
    %v247 = vld [vmem:[#allocation4 + $0x40] sm:$0xff]
    %v248 = vld [vmem:[#allocation4 + $0x48] sm:$0xff]
    %v249 = vld [vmem:[#allocation4 + $0x50] sm:$0xff]
    %v250 = vld [vmem:[#allocation4 + $0x58] sm:$0xff]
    %v251 = vld [vmem:[#allocation4 + $0x60] sm:$0xff]
    %v252 = vld [vmem:[#allocation4 + $0x68] sm:$0xff]
    %v253 = vld [vmem:[#allocation4 + $0x70] sm:$0xff]
    %v254 = vld [vmem:[#allocation4 + $0x78] sm:$0xff]
    %v255 = vld [vmem:[#allocation4 + $0x80] sm:$0xff]
    %v256 = vld [vmem:[#allocation4 + $0x88] sm:$0xff]
    %v257 = vld [vmem:[#allocation4 + $0x90] sm:$0xff]
    %v258 = vld [vmem:[#allocation4 + $0x98] sm:$0xff]
    %v259 = vld [vmem:[#allocation4 + $0xa0] sm:$0xff]
    %v260 = vld [vmem:[#allocation4 + $0xa8] sm:$0xff]
    %v261 = vld [vmem:[#allocation4 + $0xb0] sm:$0xff]
    %v262 = vld [vmem:[#allocation4 + $0xb8] sm:$0xff]
    %v263 = vld [vmem:[#allocation4 + $0xc0] sm:$0xff]
    %v264 = vld [vmem:[#allocation4 + $0xc8] sm:$0xff]
    %v265 = vld [vmem:[#allocation4 + $0xd0] sm:$0xff]
    %v266 = vld [vmem:[#allocation4 + $0xd8] sm:$0xff]
    %v267 = vld [vmem:[#allocation4 + $0xe0] sm:$0xff]
    %v268 = vld [vmem:[#allocation4 + $0xe8] sm:$0xff]
    %v269 = vld [vmem:[#allocation4 + $0xf0] sm:$0xff]
    %v270 = vld [vmem:[#allocation4 + $0xf8] sm:$0xff]
    %v271 = vld [vmem:[%s4] sm:$0x3]
    %v273 = vperm.slane %v271, 0
    %v274 = vperm.slane %v271, 1
    %v309 = vunpack.c.l.b16 %v239
    %v310 = vunpack.c.h.b16 %v239
    %v311 = vunpack.c.l.b16 %v240
    %v312 = vunpack.c.h.b16 %v240
    %v313 = vunpack.c.l.b16 %v241
    %v314 = vunpack.c.h.b16 %v241
    %v315 = vunpack.c.l.b16 %v242
    %v316 = vunpack.c.h.b16 %v242
    %v317 = vunpack.c.l.b16 %v243
    %v318 = vunpack.c.h.b16 %v243
    %v319 = vunpack.c.l.b16 %v244
    %v320 = vunpack.c.h.b16 %v244
    %v321 = vunpack.c.l.b16 %v245
    %v322 = vunpack.c.h.b16 %v245
    %v323 = vunpack.c.l.b16 %v246
    %v324 = vunpack.c.h.b16 %v246
    %v325 = vunpack.c.l.b16 %v247
    %v326 = vunpack.c.h.b16 %v247
    %v327 = vunpack.c.l.b16 %v248
    %v328 = vunpack.c.h.b16 %v248
    %v329 = vunpack.c.l.b16 %v249
    %v330 = vunpack.c.h.b16 %v249
    %v331 = vunpack.c.l.b16 %v250
    %v332 = vunpack.c.h.b16 %v250
    %v333 = vunpack.c.l.b16 %v251
    %v334 = vunpack.c.h.b16 %v251
    %v335 = vunpack.c.l.b16 %v252
    %v336 = vunpack.c.h.b16 %v252
    %v337 = vunpack.c.l.b16 %v253
    %v338 = vunpack.c.h.b16 %v253
    %v339 = vunpack.c.l.b16 %v254
    %v340 = vunpack.c.h.b16 %v254
    %v341 = vunpack.c.l.b16 %v255
    %v342 = vunpack.c.h.b16 %v255
    %v343 = vunpack.c.l.b16 %v256
    %v344 = vunpack.c.h.b16 %v256
    %v345 = vunpack.c.l.b16 %v257
    %v346 = vunpack.c.h.b16 %v257
    %v347 = vunpack.c.l.b16 %v258
    %v348 = vunpack.c.h.b16 %v258
    %v349 = vunpack.c.l.b16 %v259
    %v350 = vunpack.c.h.b16 %v259
    %v351 = vunpack.c.l.b16 %v260
    %v352 = vunpack.c.h.b16 %v260
    %v353 = vunpack.c.l.b16 %v261
    %v354 = vunpack.c.h.b16 %v261
    %v355 = vunpack.c.l.b16 %v262
    %v356 = vunpack.c.h.b16 %v262
    %v357 = vunpack.c.l.b16 %v263
    %v358 = vunpack.c.h.b16 %v263
    %v359 = vunpack.c.l.b16 %v264
    %v360 = vunpack.c.h.b16 %v264
    %v361 = vunpack.c.l.b16 %v265
    %v362 = vunpack.c.h.b16 %v265
    %v363 = vunpack.c.l.b16 %v266
    %v364 = vunpack.c.h.b16 %v266
    %v365 = vunpack.c.l.b16 %v267
    %v366 = vunpack.c.h.b16 %v267
    %v367 = vunpack.c.l.b16 %v268
    %v368 = vunpack.c.h.b16 %v268
    %v369 = vunpack.c.l.b16 %v269
    %v370 = vunpack.c.h.b16 %v269
    %v371 = vunpack.c.l.b16 %v270
    %v372 = vunpack.c.h.b16 %v270
    %v373 = vpack.c.b16 %v311, %v309
    %v374 = vpack.c.b16 %v312, %v310
    %v375 = vpack.c.b16 %v315, %v313
    %v376 = vpack.c.b16 %v316, %v314
    %v377 = vpack.c.b16 %v319, %v317
    %v378 = vpack.c.b16 %v320, %v318
    %v379 = vpack.c.b16 %v323, %v321
    %v380 = vpack.c.b16 %v324, %v322
    %v381 = vpack.c.b16 %v327, %v325
    %v382 = vpack.c.b16 %v328, %v326
    %v383 = vpack.c.b16 %v331, %v329
    %v384 = vpack.c.b16 %v332, %v330
    %v385 = vpack.c.b16 %v335, %v333
    %v386 = vpack.c.b16 %v336, %v334
    %v387 = vpack.c.b16 %v339, %v337
    %v388 = vpack.c.b16 %v340, %v338
    %v389 = vpack.c.b16 %v343, %v341
    %v390 = vpack.c.b16 %v344, %v342
    %v391 = vpack.c.b16 %v347, %v345
    %v392 = vpack.c.b16 %v348, %v346
    %v393 = vpack.c.b16 %v351, %v349
    %v394 = vpack.c.b16 %v352, %v350
    %v395 = vpack.c.b16 %v355, %v353
    %v396 = vpack.c.b16 %v356, %v354
    %v397 = vpack.c.b16 %v359, %v357
    %v398 = vpack.c.b16 %v360, %v358
    %v399 = vpack.c.b16 %v363, %v361
    %v400 = vpack.c.b16 %v364, %v362
    %v401 = vpack.c.b16 %v367, %v365
    %v402 = vpack.c.b16 %v368, %v366
    %v403 = vpack.c.b16 %v371, %v369
    %v404 = vpack.c.b16 %v372, %v370
    %437 = vmatpush.bf16.msra.mxu0 %v387
    %438 = vmatpush.bf16.msra.mxu0 %v385
    %439 = vmatpush.bf16.msra.mxu0 %v383
    %440 = vmatpush.bf16.msra.mxu0 %v381
    %441 = vmatpush.bf16.msra.mxu0 %v379
    %442 = vmatpush.bf16.msra.mxu0 %v377
    %443 = vmatpush.bf16.msra.mxu0 %v375
    %444 = vmatpush.bf16.msra.mxu0 %v373
    %445 = vmatmul.bf16.gmra.mxu0 %v237
    %v446 = vpop.f32.mrf.mxu0
    %v447 = vadd.f32 %v273, %v446
    %v448 = vpop.f32.mrf.mxu0
    %v449 = vadd.f32 %v273, %v448
    %450 = vdwg.mxu0
    %451 = vmatpush.bf16.msra.mxu0 %v403
    %452 = vmatpush.bf16.msra.mxu0 %v401
    %453 = vmatpush.bf16.msra.mxu0 %v399
    %454 = vmatpush.bf16.msra.mxu0 %v397
    %455 = vmatpush.bf16.msra.mxu0 %v395
    %456 = vmatpush.bf16.msra.mxu0 %v393
    %457 = vmatpush.bf16.msra.mxu0 %v391
    %458 = vmatpush.bf16.msra.mxu0 %v389
    %459 = vmatmul.bf16.gmra.mxu0 %v238
    %v460 = vpop.f32.mrf.mxu0
    %v461 = vadd.f32 %v447, %v460
    %v462 = vpop.f32.mrf.mxu0
    %v463 = vadd.f32 %v449, %v462
    %464 = vdwg.mxu0
    %465 = vmatpush.bf16.msra.mxu0 %v388
    %466 = vmatpush.bf16.msra.mxu0 %v386
    %467 = vmatpush.bf16.msra.mxu0 %v384
    %468 = vmatpush.bf16.msra.mxu0 %v382
    %469 = vmatpush.bf16.msra.mxu0 %v380
    %470 = vmatpush.bf16.msra.mxu0 %v378
    %471 = vmatpush.bf16.msra.mxu0 %v376
    %472 = vmatpush.bf16.msra.mxu0 %v374
    %473 = vmatmul.bf16.gmra.mxu0 %v237
    %v474 = vpop.f32.mrf.mxu0
    %v475 = vadd.f32 %v274, %v474
    %v476 = vpop.f32.mrf.mxu0
    %v477 = vadd.f32 %v274, %v476
    %478 = vdwg.mxu0
    %479 = vmatpush.bf16.msra.mxu0 %v404
    %480 = vmatpush.bf16.msra.mxu0 %v402
    %481 = vmatpush.bf16.msra.mxu0 %v400
    %482 = vmatpush.bf16.msra.mxu0 %v398
    %483 = vmatpush.bf16.msra.mxu0 %v396
    %484 = vmatpush.bf16.msra.mxu0 %v394
    %485 = vmatpush.bf16.msra.mxu0 %v392
    %486 = vmatpush.bf16.msra.mxu0 %v390
    %487 = vmatmul.bf16.gmra.mxu0 %v238
    %v488 = vpop.f32.mrf.mxu0
    %v489 = vadd.f32 %v475, %v488
    %v490 = vpop.f32.mrf.mxu0
    %v491 = vadd.f32 %v477, %v490
    %492 = vdwg.mxu0
    %v493 = vmax.f32 %v461, 0.0
    %v494 = vmax.f32 %v489, 0.0
    %v495 = vmax.f32 %v463, 0.0
    %v496 = vmax.f32 %v491, 0.0
    %v497 = vpack.c.bf16 %v495, %v493
    %v498 = vpack.c.bf16 %v496, %v494
    %v499 = vld [vmem:[#allocation6] sm:$0xff]
    %v500 = vld [vmem:[#allocation6 + $0x8] sm:$0xff]
    %v501 = vld [vmem:[#allocation6 + $0x10] sm:$0xff]
    %v502 = vld [vmem:[#allocation6 + $0x18] sm:$0xff]
    %v503 = vld [vmem:[#allocation6 + $0x20] sm:$0xff]
    %v504 = vld [vmem:[#allocation6 + $0x28] sm:$0xff]
    %v505 = vld [vmem:[#allocation6 + $0x30] sm:$0xff]
    %v506 = vld [vmem:[#allocation6 + $0x38] sm:$0xff]
    %v507 = vld [vmem:[#allocation6 + $0x40] sm:$0xff]
    %v508 = vld [vmem:[#allocation6 + $0x48] sm:$0xff]
    %v509 = vld [vmem:[#allocation6 + $0x50] sm:$0xff]
    %v510 = vld [vmem:[#allocation6 + $0x58] sm:$0xff]
    %v511 = vld [vmem:[#allocation6 + $0x60] sm:$0xff]
    %v512 = vld [vmem:[#allocation6 + $0x68] sm:$0xff]
    %v513 = vld [vmem:[#allocation6 + $0x70] sm:$0xff]
    %v514 = vld [vmem:[#allocation6 + $0x78] sm:$0xff]
    %v515 = vld [vmem:[#allocation6 + $0x80] sm:$0xff]
    %v516 = vld [vmem:[#allocation6 + $0x88] sm:$0xff]
    %v517 = vld [vmem:[#allocation6 + $0x90] sm:$0xff]
    %v518 = vld [vmem:[#allocation6 + $0x98] sm:$0xff]
    %v519 = vld [vmem:[#allocation6 + $0xa0] sm:$0xff]
    %v520 = vld [vmem:[#allocation6 + $0xa8] sm:$0xff]
    %v521 = vld [vmem:[#allocation6 + $0xb0] sm:$0xff]
    %v522 = vld [vmem:[#allocation6 + $0xb8] sm:$0xff]
    %v523 = vld [vmem:[#allocation6 + $0xc0] sm:$0xff]
    %v524 = vld [vmem:[#allocation6 + $0xc8] sm:$0xff]
    %v525 = vld [vmem:[#allocation6 + $0xd0] sm:$0xff]
    %v526 = vld [vmem:[#allocation6 + $0xd8] sm:$0xff]
    %v527 = vld [vmem:[#allocation6 + $0xe0] sm:$0xff]
    %v528 = vld [vmem:[#allocation6 + $0xe8] sm:$0xff]
    %v529 = vld [vmem:[#allocation6 + $0xf0] sm:$0xff]
    %v530 = vld [vmem:[#allocation6 + $0xf8] sm:$0xff]
    %v531 = vld [vmem:[%s6] sm:$0x3]
    %v533 = vperm.slane %v531, 0
    %v534 = vperm.slane %v531, 1
    %v569 = vunpack.c.l.b16 %v499
    %v570 = vunpack.c.h.b16 %v499
    %v571 = vunpack.c.l.b16 %v500
    %v572 = vunpack.c.h.b16 %v500
    %v573 = vunpack.c.l.b16 %v501
    %v574 = vunpack.c.h.b16 %v501
    %v575 = vunpack.c.l.b16 %v502
    %v576 = vunpack.c.h.b16 %v502
    %v577 = vunpack.c.l.b16 %v503
    %v578 = vunpack.c.h.b16 %v503
    %v579 = vunpack.c.l.b16 %v504
    %v580 = vunpack.c.h.b16 %v504
    %v581 = vunpack.c.l.b16 %v505
    %v582 = vunpack.c.h.b16 %v505
    %v583 = vunpack.c.l.b16 %v506
    %v584 = vunpack.c.h.b16 %v506
    %v585 = vunpack.c.l.b16 %v507
    %v586 = vunpack.c.h.b16 %v507
    %v587 = vunpack.c.l.b16 %v508
    %v588 = vunpack.c.h.b16 %v508
    %v589 = vunpack.c.l.b16 %v509
    %v590 = vunpack.c.h.b16 %v509
    %v591 = vunpack.c.l.b16 %v510
    %v592 = vunpack.c.h.b16 %v510
    %v593 = vunpack.c.l.b16 %v511
    %v594 = vunpack.c.h.b16 %v511
    %v595 = vunpack.c.l.b16 %v512
    %v596 = vunpack.c.h.b16 %v512
    %v597 = vunpack.c.l.b16 %v513
    %v598 = vunpack.c.h.b16 %v513
    %v599 = vunpack.c.l.b16 %v514
    %v600 = vunpack.c.h.b16 %v514
    %v601 = vunpack.c.l.b16 %v515
    %v602 = vunpack.c.h.b16 %v515
    %v603 = vunpack.c.l.b16 %v516
    %v604 = vunpack.c.h.b16 %v516
    %v605 = vunpack.c.l.b16 %v517
    %v606 = vunpack.c.h.b16 %v517
    %v607 = vunpack.c.l.b16 %v518
    %v608 = vunpack.c.h.b16 %v518
    %v609 = vunpack.c.l.b16 %v519
    %v610 = vunpack.c.h.b16 %v519
    %v611 = vunpack.c.l.b16 %v520
    %v612 = vunpack.c.h.b16 %v520
    %v613 = vunpack.c.l.b16 %v521
    %v614 = vunpack.c.h.b16 %v521
    %v615 = vunpack.c.l.b16 %v522
    %v616 = vunpack.c.h.b16 %v522
    %v617 = vunpack.c.l.b16 %v523
    %v618 = vunpack.c.h.b16 %v523
    %v619 = vunpack.c.l.b16 %v524
    %v620 = vunpack.c.h.b16 %v524
    %v621 = vunpack.c.l.b16 %v525
    %v622 = vunpack.c.h.b16 %v525
    %v623 = vunpack.c.l.b16 %v526
    %v624 = vunpack.c.h.b16 %v526
    %v625 = vunpack.c.l.b16 %v527
    %v626 = vunpack.c.h.b16 %v527
    %v627 = vunpack.c.l.b16 %v528
    %v628 = vunpack.c.h.b16 %v528
    %v629 = vunpack.c.l.b16 %v529
    %v630 = vunpack.c.h.b16 %v529
    %v631 = vunpack.c.l.b16 %v530
    %v632 = vunpack.c.h.b16 %v530
    %v633 = vpack.c.b16 %v571, %v569
    %v634 = vpack.c.b16 %v572, %v570
    %v635 = vpack.c.b16 %v575, %v573
    %v636 = vpack.c.b16 %v576, %v574
    %v637 = vpack.c.b16 %v579, %v577
    %v638 = vpack.c.b16 %v580, %v578
    %v639 = vpack.c.b16 %v583, %v581
    %v640 = vpack.c.b16 %v584, %v582
    %v641 = vpack.c.b16 %v587, %v585
    %v642 = vpack.c.b16 %v588, %v586
    %v643 = vpack.c.b16 %v591, %v589
    %v644 = vpack.c.b16 %v592, %v590
    %v645 = vpack.c.b16 %v595, %v593
    %v646 = vpack.c.b16 %v596, %v594
    %v647 = vpack.c.b16 %v599, %v597
    %v648 = vpack.c.b16 %v600, %v598
    %v649 = vpack.c.b16 %v603, %v601
    %v650 = vpack.c.b16 %v604, %v602
    %v651 = vpack.c.b16 %v607, %v605
    %v652 = vpack.c.b16 %v608, %v606
    %v653 = vpack.c.b16 %v611, %v609
    %v654 = vpack.c.b16 %v612, %v610
    %v655 = vpack.c.b16 %v615, %v613
    %v656 = vpack.c.b16 %v616, %v614
    %v657 = vpack.c.b16 %v619, %v617
    %v658 = vpack.c.b16 %v620, %v618
    %v659 = vpack.c.b16 %v623, %v621
    %v660 = vpack.c.b16 %v624, %v622
    %v661 = vpack.c.b16 %v627, %v625
    %v662 = vpack.c.b16 %v628, %v626
    %v663 = vpack.c.b16 %v631, %v629
    %v664 = vpack.c.b16 %v632, %v630
    %697 = vmatpush.bf16.msra.mxu0 %v647
    %698 = vmatpush.bf16.msra.mxu0 %v645
    %699 = vmatpush.bf16.msra.mxu0 %v643
    %700 = vmatpush.bf16.msra.mxu0 %v641
    %701 = vmatpush.bf16.msra.mxu0 %v639
    %702 = vmatpush.bf16.msra.mxu0 %v637
    %703 = vmatpush.bf16.msra.mxu0 %v635
    %704 = vmatpush.bf16.msra.mxu0 %v633
    %705 = vmatmul.bf16.gmra.mxu0 %v497
    %v706 = vpop.f32.mrf.mxu0
    %v707 = vadd.f32 %v533, %v706
    %v708 = vpop.f32.mrf.mxu0
    %v709 = vadd.f32 %v533, %v708
    %710 = vdwg.mxu0
    %711 = vmatpush.bf16.msra.mxu0 %v663
    %712 = vmatpush.bf16.msra.mxu0 %v661
    %713 = vmatpush.bf16.msra.mxu0 %v659
    %714 = vmatpush.bf16.msra.mxu0 %v657
    %715 = vmatpush.bf16.msra.mxu0 %v655
    %716 = vmatpush.bf16.msra.mxu0 %v653
    %717 = vmatpush.bf16.msra.mxu0 %v651
    %718 = vmatpush.bf16.msra.mxu0 %v649
    %719 = vmatmul.bf16.gmra.mxu0 %v498
    %v720 = vpop.f32.mrf.mxu0
    %v721 = vadd.f32 %v707, %v720
    %v722 = vpop.f32.mrf.mxu0
    %v723 = vadd.f32 %v709, %v722
    %724 = vdwg.mxu0
    %725 = vmatpush.bf16.msra.mxu0 %v648
    %726 = vmatpush.bf16.msra.mxu0 %v646
    %727 = vmatpush.bf16.msra.mxu0 %v644
    %728 = vmatpush.bf16.msra.mxu0 %v642
    %729 = vmatpush.bf16.msra.mxu0 %v640
    %730 = vmatpush.bf16.msra.mxu0 %v638
    %731 = vmatpush.bf16.msra.mxu0 %v636
    %732 = vmatpush.bf16.msra.mxu0 %v634
    %733 = vmatmul.bf16.gmra.mxu0 %v497
    %v734 = vpop.f32.mrf.mxu0
    %v735 = vadd.f32 %v534, %v734
    %v736 = vpop.f32.mrf.mxu0
    %v737 = vadd.f32 %v534, %v736
    %738 = vdwg.mxu0
    %739 = vmatpush.bf16.msra.mxu0 %v664
    %740 = vmatpush.bf16.msra.mxu0 %v662
    %741 = vmatpush.bf16.msra.mxu0 %v660
    %742 = vmatpush.bf16.msra.mxu0 %v658
    %743 = vmatpush.bf16.msra.mxu0 %v656
    %744 = vmatpush.bf16.msra.mxu0 %v654
    %745 = vmatpush.bf16.msra.mxu0 %v652
    %746 = vmatpush.bf16.msra.mxu0 %v650
    %747 = vmatmul.bf16.gmra.mxu0 %v498
    %v748 = vpop.f32.mrf.mxu0
    %v749 = vadd.f32 %v735, %v748
    %v750 = vpop.f32.mrf.mxu0
    %v751 = vadd.f32 %v737, %v750
    %752 = vdwg.mxu0
    %v753 = vmax.f32 %v721, 0.0
    %v754 = vmax.f32 %v749, 0.0
    %v755 = vmax.f32 %v723, 0.0
    %v756 = vmax.f32 %v751, 0.0
    %v757 = vpack.c.bf16 %v755, %v753
    %v758 = vpack.c.bf16 %v756, %v754
    %v759 = vld [vmem:[#allocation7] sm:$0xf]
    %v760 = vld [vmem:[#allocation7 + $0x4] sm:$0xf]
    %v761 = vld [vmem:[#allocation7 + $0x8] sm:$0xf]
    %v762 = vld [vmem:[#allocation7 + $0xc] sm:$0xf]
    %v763 = vld [vmem:[#allocation7 + $0x10] sm:$0xf]
    %v764 = vld [vmem:[#allocation7 + $0x14] sm:$0xf]
    %v765 = vld [vmem:[#allocation7 + $0x18] sm:$0xf]
    %v766 = vld [vmem:[#allocation7 + $0x1c] sm:$0xf]
    %v767 = vld [vmem:[#allocation7 + $0x20] sm:$0xf]
    %v768 = vld [vmem:[#allocation7 + $0x24] sm:$0xf]
    %v769 = vld [vmem:[#allocation7 + $0x28] sm:$0xf]
    %v770 = vld [vmem:[#allocation7 + $0x2c] sm:$0xf]
    %v771 = vld [vmem:[#allocation7 + $0x30] sm:$0xf]
    %v772 = vld [vmem:[#allocation7 + $0x34] sm:$0xf]
    %v773 = vld [vmem:[#allocation7 + $0x38] sm:$0xf]
    %v774 = vld [vmem:[#allocation7 + $0x3c] sm:$0xf]
    %v775 = vld [vmem:[#allocation7 + $0x40] sm:$0xf]
    %v776 = vld [vmem:[#allocation7 + $0x44] sm:$0xf]
    %v777 = vld [vmem:[#allocation7 + $0x48] sm:$0xf]
    %v778 = vld [vmem:[#allocation7 + $0x4c] sm:$0xf]
    %v779 = vld [vmem:[#allocation7 + $0x50] sm:$0xf]
    %v780 = vld [vmem:[#allocation7 + $0x54] sm:$0xf]
    %v781 = vld [vmem:[#allocation7 + $0x58] sm:$0xf]
    %v782 = vld [vmem:[#allocation7 + $0x5c] sm:$0xf]
    %v783 = vld [vmem:[#allocation7 + $0x60] sm:$0xf]
    %v784 = vld [vmem:[#allocation7 + $0x64] sm:$0xf]
    %v785 = vld [vmem:[#allocation7 + $0x68] sm:$0xf]
    %v786 = vld [vmem:[#allocation7 + $0x6c] sm:$0xf]
    %v787 = vld [vmem:[#allocation7 + $0x70] sm:$0xf]
    %v788 = vld [vmem:[#allocation7 + $0x74] sm:$0xf]
    %v789 = vld [vmem:[#allocation7 + $0x78] sm:$0xf]
    %v790 = vld [vmem:[#allocation7 + $0x7c] sm:$0xf]
    %v791 = vld [vmem:[%s8] sm:$0x1]
    %v793 = vperm.slane %v791, 0
    %v827 = vunpack.c.l.b16 %v759
    %v828 = vunpack.c.l.b16 %v760
    %v829 = vunpack.c.l.b16 %v761
    %v830 = vunpack.c.l.b16 %v762
    %v831 = vunpack.c.l.b16 %v763
    %v832 = vunpack.c.l.b16 %v764
    %v833 = vunpack.c.l.b16 %v765
    %v834 = vunpack.c.l.b16 %v766
    %v835 = vunpack.c.l.b16 %v767
    %v836 = vunpack.c.l.b16 %v768
    %v837 = vunpack.c.l.b16 %v769
    %v838 = vunpack.c.l.b16 %v770
    %v839 = vunpack.c.l.b16 %v771
    %v840 = vunpack.c.l.b16 %v772
    %v841 = vunpack.c.l.b16 %v773
    %v842 = vunpack.c.l.b16 %v774
    %v843 = vunpack.c.l.b16 %v775
    %v844 = vunpack.c.l.b16 %v776
    %v845 = vunpack.c.l.b16 %v777
    %v846 = vunpack.c.l.b16 %v778
    %v847 = vunpack.c.l.b16 %v779
    %v848 = vunpack.c.l.b16 %v780
    %v849 = vunpack.c.l.b16 %v781
    %v850 = vunpack.c.l.b16 %v782
    %v851 = vunpack.c.l.b16 %v783
    %v852 = vunpack.c.l.b16 %v784
    %v853 = vunpack.c.l.b16 %v785
    %v854 = vunpack.c.l.b16 %v786
    %v855 = vunpack.c.l.b16 %v787
    %v856 = vunpack.c.l.b16 %v788
    %v857 = vunpack.c.l.b16 %v789
    %v858 = vunpack.c.l.b16 %v790
    %v859 = vpack.c.b16 %v828, %v827
    %v860 = vpack.c.b16 %v830, %v829
    %v861 = vpack.c.b16 %v832, %v831
    %v862 = vpack.c.b16 %v834, %v833
    %v863 = vpack.c.b16 %v836, %v835
    %v864 = vpack.c.b16 %v838, %v837
    %v865 = vpack.c.b16 %v840, %v839
    %v866 = vpack.c.b16 %v842, %v841
    %v867 = vpack.c.b16 %v844, %v843
    %v868 = vpack.c.b16 %v846, %v845
    %v869 = vpack.c.b16 %v848, %v847
    %v870 = vpack.c.b16 %v850, %v849
    %v871 = vpack.c.b16 %v852, %v851
    %v872 = vpack.c.b16 %v854, %v853
    %v873 = vpack.c.b16 %v856, %v855
    %v874 = vpack.c.b16 %v858, %v857
    %891 = vmatpush.bf16.msra.mxu0 %v866
    %892 = vmatpush.bf16.msra.mxu0 %v865
    %893 = vmatpush.bf16.msra.mxu0 %v864
    %894 = vmatpush.bf16.msra.mxu0 %v863
    %895 = vmatpush.bf16.msra.mxu0 %v862
    %896 = vmatpush.bf16.msra.mxu0 %v861
    %897 = vmatpush.bf16.msra.mxu0 %v860
    %898 = vmatpush.bf16.msra.mxu0 %v859
    %899 = vmatmul.bf16.gmra.mxu0 %v757
    %v900 = vpop.f32.mrf.mxu0
    %v901 = vadd.f32 %v793, %v900
    %v902 = vpop.f32.mrf.mxu0
    %v903 = vadd.f32 %v793, %v902
    %904 = vdwg.mxu0
    %905 = vmatpush.bf16.msra.mxu0 %v874
    %906 = vmatpush.bf16.msra.mxu0 %v873
    %907 = vmatpush.bf16.msra.mxu0 %v872
    %908 = vmatpush.bf16.msra.mxu0 %v871
    %909 = vmatpush.bf16.msra.mxu0 %v870
    %910 = vmatpush.bf16.msra.mxu0 %v869
    %911 = vmatpush.bf16.msra.mxu0 %v868
    %912 = vmatpush.bf16.msra.mxu0 %v867
    %913 = vmatmul.bf16.gmra.mxu0 %v758
    %v914 = vpop.f32.mrf.mxu0
    %v915 = vadd.f32 %v901, %v914
    %v916 = vpop.f32.mrf.mxu0
    %v917 = vadd.f32 %v903, %v916
    %918 = vdwg.mxu0
    %v919 = vtanh.pop %v915
    %v920 = vtanh.pop %v917
    %921 = vst [vmem:[%s9] sm:$0xff] %v919
    %922 = vst [vmem:[%s9 + $0x8] sm:$0xff] %v920
    // Predicated region
    $region54: #{_actor_forward_jit.1} parent=1 // pred_check
      _
    $region55: #{_actor_forward_jit.1} parent=1 // pred_check_branch
      %924 = sbr.rel (0) target = $region57
    $region56: #{_actor_forward_jit.1} parent=1 // pred_region
      _
    $region57: #{_actor_forward_jit.1} parent=1 // pred_fallthru
      _
    // Predicated region
    $region58: #{_actor_forward_jit.1} parent=1 // pred_check
      _
    $region59: #{_actor_forward_jit.1} parent=1 // pred_check_branch
      %926 = sbr.rel (0) target = $region61
    $region60: #{_actor_forward_jit.1} parent=1 // pred_region
      _
    $region61: #{_actor_forward_jit.1} parent=1 // pred_fallthru
      _
    %927 = vsyncpa [#allocation3], 1
    %928 = vsyncpa [#allocation5], 1
    %929 = vsyncpa [#allocation8], 1

</llo_original>
